<compile_context>
chip_gen: v5e
topology: v5e:2x2
jax: 0.10.0
libtpu: 0.0.40
codegen_flags: <defaults>
</compile_context>

<pallas_src>
import functools
import math

import jax
import jax.numpy as jnp
from jax import lax
from jax.experimental import pallas as pl
from jax.experimental.pallas import tpu as pltpu


def _pick_block(n):
    for cand in (512, 256, 128):
        if n % cand == 0:
            return cand
    return n


def _default_vmem_limit_bytes():
    # ~3/4 of physical VMEM: ~96 MiB on v5e/v6e (128 MiB), ~48 MiB on v7x (64 MiB).
    try:
        cap = int(pltpu.get_tpu_info().vmem_capacity_bytes)
        return max(32 * 1024 * 1024, (cap * 3) // 4)
    except Exception:
        return None


# ---------------------------------------------------------------------------
# Stage 1: per-head linear projection  x(B,L,hid) @ W_h + b_h -> (B, H, L, D)
# Weights stay VMEM-resident (constant index_map); head is sliced in-kernel.
# ---------------------------------------------------------------------------
def _proj_kernel(x_ref, w_ref, b_ref, o_ref):
    h = pl.program_id(2)
    y = jnp.dot(x_ref[0], w_ref[h], preferred_element_type=jnp.float32) + b_ref[h]
    o_ref[0, 0] = y.astype(o_ref.dtype)


def _project_heads(x, w_h, b_h, *, out_dtype, vmem_limit):
    B, L, hid = x.shape
    H, _, D = w_h.shape
    block_l = _pick_block(L)
    nl = L // block_l
    return pl.pallas_call(
        _proj_kernel,
        out_shape=jax.ShapeDtypeStruct((B, H, L, D), out_dtype),
        grid=(B, nl, H),
        in_specs=[
            pl.BlockSpec((1, block_l, hid), lambda b, lt, h: (b, lt, 0)),
            pl.BlockSpec((H, hid, D), lambda b, lt, h: (0, 0, 0)),   # resident weights
            pl.BlockSpec((H, 1, D), lambda b, lt, h: (0, 0, 0)),     # resident biases
        ],
        out_specs=pl.BlockSpec((1, 1, block_l, D), lambda b, lt, h: (b, h, lt, 0)),
        compiler_params=pltpu.CompilerParams(
            dimension_semantics=("parallel", "parallel", "arbitrary"),
            vmem_limit_bytes=vmem_limit),
    )(x, w_h, b_h)


# ---------------------------------------------------------------------------
# Stage 2: attention + fc_o, grid (batch, q-tile, head); head axis "arbitrary"
# so the (block_q, hid) output block stays resident while heads accumulate.
# ---------------------------------------------------------------------------
def _attn_kernel(q_ref, k_ref, v_ref, wo_ref, bo_ref, *refs,
                 n_heads, head_dim, fuse_fc_o, store_attn, compute_dtype):
    if store_attn:
        out_ref, attn_ref, acc_ref = refs
    else:
        out_ref, acc_ref = refs
        attn_ref = None

    h = pl.program_id(2)

    qh = q_ref[0, 0]            # (block_q, D)  compute_dtype, scale folded into Wq
    kh = k_ref[0, 0]            # (Lk, D)
    vh = v_ref[0, 0]            # (Lk, D)

    # Scores: contract last dims directly -> no K transpose.
    s = lax.dot_general(qh, kh, dimension_numbers=(((1,), (1,)), ((), ())),
                        preferred_element_type=jnp.float32)           # (block_q, Lk)

    # Numerically-stable softmax, f32 math, reciprocal on the EUP slot.
    s = s - jnp.max(s, axis=-1, keepdims=True)
    e = jnp.exp(s)
    a = e * pl.reciprocal(jnp.sum(e, axis=-1, keepdims=True), approx=True)

    if store_attn:
        attn_ref[0, 0] = a.astype(attn_ref.dtype)

    ctx = jnp.dot(a.astype(compute_dtype), vh,
                  preferred_element_type=jnp.float32)                 # (block_q, D)

    if fuse_fc_o:
        # Write ctx_h into the merged-head scratch at lane offset h*D and do a
        # single K=hid fc_o matmul at the last head (full MXU depth).
        off = pl.multiple_of(h * head_dim, head_dim)
        acc_ref[:, pl.ds(off, head_dim)] = ctx.astype(acc_ref.dtype)

        @pl.when(h == n_heads - 1)
        def _():
            y = jnp.dot(acc_ref[...], wo_ref[...],
                        preferred_element_type=jnp.float32) + bo_ref[...]
            out_ref[0] = y.astype(out_ref.dtype)
    else:
        # fc_o per head: concat_h(ctx_h) @ Wo == sum_h ctx_h @ Wo[h*D:(h+1)*D, :]
        y_h = jnp.dot(ctx.astype(compute_dtype), wo_ref[h],
                      preferred_element_type=jnp.float32)             # (block_q, hid)

        @pl.when(h == 0)
        def _():
            acc_ref[...] = jnp.zeros_like(acc_ref)

        acc_ref[...] += y_h

        @pl.when(h == n_heads - 1)
        def _():
            out_ref[0] = (acc_ref[...] + bo_ref[...]).astype(out_ref.dtype)


def multi_head_attention(query, key, value, params, n_heads, *,
                         compute_dtype=jnp.bfloat16,
                         attn_dtype=jnp.bfloat16,
                         out_dtype=None,
                         block_q=None,
                         return_attn=True,
                         fuse_fc_o=None):
    """Pallas implementation of MultiHeadAttentionLayer.forward (mask=None, use_bias=None)."""
    B, Lq, hid = query.shape
    Bk, Lk, hid_k = key.shape
    assert value.shape == key.shape and Bk == B and hid_k == hid
    assert hid % n_heads == 0
    H = n_heads
    D = hid // H
    scale = 1.0 / math.sqrt(D)

    if out_dtype is None:
        out_dtype = query.dtype
    if fuse_fc_o is None:
        fuse_fc_o = (D % 128 == 0)
    if block_q is None:
        block_q = _pick_block(Lq)
    assert Lq % block_q == 0
    nq = Lq // block_q

    vmem_limit = _default_vmem_limit_bytes()
    f32 = jnp.float32
    cd = compute_dtype

    # Head-split weights; the 1/sqrt(D) softmax scale folded into Wq/bq.
    wq_h = (params["wq"].reshape(hid, H, D).transpose(1, 0, 2) * scale).astype(cd)
    wk_h = params["wk"].reshape(hid, H, D).transpose(1, 0, 2).astype(cd)
    wv_h = params["wv"].reshape(hid, H, D).transpose(1, 0, 2).astype(cd)
    bq_h = (params["bq"].reshape(H, 1, D) * scale).astype(f32)
    bk_h = params["bk"].reshape(H, 1, D).astype(f32)
    bv_h = params["bv"].reshape(H, 1, D).astype(f32)
    bo = params["bo"].astype(f32)                                       # (1, hid)

    # Stage 1: hoisted per-head projections -> (B, H, L, D), computed once.
    qh = _project_heads(query.astype(cd), wq_h, bq_h, out_dtype=cd, vmem_limit=vmem_limit)
    kh = _project_heads(key.astype(cd), wk_h, bk_h, out_dtype=cd, vmem_limit=vmem_limit)
    vh = _project_heads(value.astype(cd), wv_h, bv_h, out_dtype=cd, vmem_limit=vmem_limit)

    if fuse_fc_o:
        wo_arg = params["wo"].astype(cd)                                # (hid, hid)
        wo_spec = pl.BlockSpec((hid, hid), lambda b, qt, h: (0, 0))     # resident
        acc = pltpu.VMEM((block_q, hid), cd)        # merged-head context scratch
    else:
        wo_arg = params["wo"].reshape(H, D, hid).astype(cd)             # (H, D, hid)
        wo_spec = pl.BlockSpec((H, D, hid), lambda b, qt, h: (0, 0, 0))  # resident
        acc = pltpu.VMEM((block_q, hid), f32)       # fc_o accumulator

    out_shapes = [jax.ShapeDtypeStruct((B, Lq, hid), out_dtype)]
    out_specs = [pl.BlockSpec((1, block_q, hid), lambda b, qt, h: (b, qt, 0))]
    if return_attn:
        out_shapes.append(jax.ShapeDtypeStruct((B, H, Lq, Lk), attn_dtype))
        out_specs.append(pl.BlockSpec((1, 1, block_q, Lk), lambda b, qt, h: (b, h, qt, 0)))

    kernel = functools.partial(_attn_kernel, n_heads=H, head_dim=D,
                               fuse_fc_o=fuse_fc_o, store_attn=return_attn,
                               compute_dtype=cd)

    results = pl.pallas_call(
        kernel,
        out_shape=tuple(out_shapes),
        grid=(B, nq, H),
        in_specs=[
            pl.BlockSpec((1, 1, block_q, D), lambda b, qt, h: (b, h, qt, 0)),
            pl.BlockSpec((1, 1, Lk, D), lambda b, qt, h: (b, h, 0, 0)),
            pl.BlockSpec((1, 1, Lk, D), lambda b, qt, h: (b, h, 0, 0)),
            wo_spec,
            pl.BlockSpec((1, hid), lambda b, qt, h: (0, 0)),
        ],
        out_specs=tuple(out_specs),
        scratch_shapes=[acc],
        compiler_params=pltpu.CompilerParams(
            dimension_semantics=("parallel", "parallel", "arbitrary"),
            vmem_limit_bytes=vmem_limit),
    )(qh, kh, vh, wo_arg, bo)

    # TODO(synk): ScaledDotProductAttention source not provided -> only the default
    # use_bias=None path is reproduced; the positional-bias / alpha tensors
    # (fc_p / fc_up / fc_ud / fc_us) are dead on that path and not computed.
    if return_attn:
        x, attn = results
        return x, attn
    (x,) = results
    return x, None


# ---------------------------------------------------------------------------
# Reference + test harness
# ---------------------------------------------------------------------------
def _init_params(key, hid, n_heads):
    head_dim = hid // n_heads
    ks = jax.random.split(key, 16)
    s = 0.1

    def lin(kw, kb, d_in, d_out):
        return (jax.random.normal(kw, (d_in, d_out), jnp.float32) * s,
                jax.random.normal(kb, (1, d_out), jnp.float32) * s)

    p = {}
    p["wq"], p["bq"] = lin(ks[0], ks[1], hid, hid)
    p["wk"], p["bk"] = lin(ks[2], ks[3], hid, hid)
    p["wv"], p["bv"] = lin(ks[4], ks[5], hid, hid)
    p["wo"], p["bo"] = lin(ks[6], ks[7], hid, hid)
    # Present in the module but unused on the use_bias=None path:
    p["wp"], p["bp"] = lin(ks[8], ks[9], hid, hid)
    p["wup"], p["bup"] = lin(ks[10], ks[11], head_dim, 1)
    p["wud"], p["bud"] = lin(ks[12], ks[13], head_dim, 1)
    p["wus"], p["bus"] = lin(ks[14], ks[15], hid, n_heads)
    return p


def _reference(query, key, value, params, n_heads):
    """Plain-JAX reference mirroring the PyTorch forward (use_bias=None, eval)."""
    B, L, hid = query.shape
    D = hid // n_heads

    def heads(x):
        return x.reshape(B, L, n_heads, D).transpose(0, 2, 1, 3)

    q = heads(query @ params["wq"] + params["bq"][0])
    k = heads(key @ params["wk"] + params["bk"][0])
    v = heads(value @ params["wv"] + params["bv"][0])
    attn = jax.nn.softmax(jnp.einsum("bhqd,bhkd->bhqk", q / math.sqrt(D), k), axis=-1)
    out = jnp.einsum("bhqk,bhkd->bhqd", attn, v)
    x = out.transpose(0, 2, 1, 3).reshape(B, L, hid)
    x = x @ params["wo"] + params["bo"][0]
    return x, attn


if __name__ == "__main__":
    key0 = jax.random.PRNGKey(0)

    # ---- Config A: hid=32, 4 heads (head_dim=8 -> per-head-accumulated fc_o path)
    B, L, HID, NH = 2, 8, 32, 4
    kq, kk, kv, kp = jax.random.split(jax.random.fold_in(key0, 0), 4)
    query = jax.random.normal(kq, (B, L, HID), jnp.float32)
    key_t = jax.random.normal(kk, (B, L, HID), jnp.float32)
    value = jax.random.normal(kv, (B, L, HID), jnp.float32)
    params = _init_params(kp, HID, NH)
    ref_out, ref_attn = _reference(query, key_t, value, params, NH)

    # Structural-correctness run (f32 compute, f32 attn).
    out32, attn32 = multi_head_attention(query, key_t, value, params, NH,
                                         compute_dtype=jnp.float32,
                                         attn_dtype=jnp.float32)
    jax.block_until_ready((out32, attn32))
    assert jnp.allclose(out32, ref_out, atol=2e-2, rtol=2e-2)
    assert jnp.allclose(attn32, ref_attn, atol=2e-2, rtol=2e-2)

    # Default performance configuration (bf16 MXU inputs, bf16 attn writeback).
    out, attn = multi_head_attention(query, key_t, value, params, NH)
    jax.block_until_ready((out, attn))
    assert jnp.allclose(out, ref_out, atol=6e-2, rtol=6e-2)
    assert jnp.allclose(attn.astype(jnp.float32), ref_attn, atol=6e-2, rtol=6e-2)

    # Attention output skipped entirely (biggest HBM-traffic saver).
    out_na, attn_na = multi_head_attention(query, key_t, value, params, NH,
                                           return_attn=False)
    jax.block_until_ready(out_na)
    assert attn_na is None
    assert jnp.allclose(out_na, ref_out, atol=6e-2, rtol=6e-2)

    # ---- Config B: hid=256, 2 heads (head_dim=128 -> fused single-matmul fc_o path)
    B2, L2, HID2, NH2 = 2, 16, 256, 2
    kq2, kk2, kv2, kp2 = jax.random.split(jax.random.fold_in(key0, 1), 4)
    query2 = jax.random.normal(kq2, (B2, L2, HID2), jnp.float32)
    key2 = jax.random.normal(kk2, (B2, L2, HID2), jnp.float32)
    value2 = jax.random.normal(kv2, (B2, L2, HID2), jnp.float32)
    params2 = _init_params(kp2, HID2, NH2)
    ref_out2, ref_attn2 = _reference(query2, key2, value2, params2, NH2)

    out2_32, attn2_32 = multi_head_attention(query2, key2, value2, params2, NH2,
                                             compute_dtype=jnp.float32,
                                             attn_dtype=jnp.float32)
    jax.block_until_ready((out2_32, attn2_32))
    assert jnp.allclose(out2_32, ref_out2, atol=2e-2, rtol=2e-2)
    assert jnp.allclose(attn2_32, ref_attn2, atol=2e-2, rtol=2e-2)

    out2, attn2 = multi_head_attention(query2, key2, value2, params2, NH2)
    jax.block_until_ready((out2, attn2))
    assert jnp.allclose(out2, ref_out2, atol=2e-1, rtol=2e-1)
    assert jnp.allclose(attn2.astype(jnp.float32), ref_attn2, atol=2e-1, rtol=2e-1)

    print("KERNEL_OK")
</pallas_src>

<mosaic_0001>
module attributes {stable_mosaic.version = 11 : i64} {
  func.func @_proj_kernel(%arg0: i32, %arg1: i32, %arg2: i32, %arg3: memref<1x8x32xf32, #tpu.memory_space<vmem>>, %arg4: memref<4x32x8xf32, #tpu.memory_space<vmem>>, %arg5: memref<4x1x8xf32, #tpu.memory_space<vmem>>, %arg6: memref<1x1x8x8xf32, #tpu.memory_space<vmem>>) attributes {dimension_semantics = [#tpu.dimension_semantics<parallel>, #tpu.dimension_semantics<parallel>, #tpu.dimension_semantics<arbitrary>], iteration_bounds = array<i64: 2, 1, 4>, scalar_prefetch = 0 : i64, scratch_operands = 0 : i64, tpu.core_type = #tpu.core_type<tc>, window_params = [{transform_indices = @transform_0, window_bounds = array<i64: 1, 8, 32>}, {pipeline_mode = #tpu.pipeline_mode<synchronous>, transform_indices = @transform_1, window_bounds = array<i64: 4, 32, 8>}, {pipeline_mode = #tpu.pipeline_mode<synchronous>, transform_indices = @transform_2, window_bounds = array<i64: 4, 1, 8>}, {transform_indices = @transform_3, window_bounds = array<i64: 1, 1, 8, 8>}]} {
    %c0 = arith.constant 0 : index
    %c0_0 = arith.constant 0 : index
    %c0_1 = arith.constant 0 : index
    %0 = vector.load %arg3[%c0, %c0_0, %c0_1] : memref<1x8x32xf32, #tpu.memory_space<vmem>>, vector<1x8x32xf32>
    %1 = vector.shape_cast %0 : vector<1x8x32xf32> to vector<8x32xf32>
    %2 = arith.index_cast %arg2 : i32 to index
    %c0_2 = arith.constant 0 : index
    %c0_3 = arith.constant 0 : index
    %3 = vector.load %arg4[%2, %c0_2, %c0_3] : memref<4x32x8xf32, #tpu.memory_space<vmem>>, vector<1x32x8xf32>
    %4 = vector.shape_cast %3 : vector<1x32x8xf32> to vector<32x8xf32>
    %cst = arith.constant dense<0.000000e+00> : vector<8x8xf32>
    %5 = tpu.matmul %1, %4, %cst {dimension_numbers = #tpu.dot_dimension_numbers<[1], [0], [0], [1], [0, 0, 1, 1], [], []>} : vector<8x32xf32>, vector<32x8xf32>, vector<8x8xf32> -> vector<8x8xf32>
    %6 = arith.index_cast %arg2 : i32 to index
    %c0_4 = arith.constant 0 : index
    %c0_5 = arith.constant 0 : index
    %7 = vector.load %arg5[%6, %c0_4, %c0_5] : memref<4x1x8xf32, #tpu.memory_space<vmem>>, vector<1x1x8xf32>
    %8 = vector.shape_cast %7 : vector<1x1x8xf32> to vector<1x8xf32>
    %9 = vector.broadcast %8 : vector<1x8xf32> to vector<8x8xf32>
    %10 = arith.addf %5, %9 : vector<8x8xf32>
    %c0_6 = arith.constant 0 : index
    %c0_7 = arith.constant 0 : index
    %c0_8 = arith.constant 0 : index
    %c0_9 = arith.constant 0 : index
    %11 = vector.load %arg6[%c0_6, %c0_7, %c0_8, %c0_9] : memref<1x1x8x8xf32, #tpu.memory_space<vmem>>, vector<1x1x8x8xf32>
    %12 = vector.shape_cast %11 : vector<1x1x8x8xf32> to vector<8x8xf32>
    %13 = vector.shape_cast %10 : vector<8x8xf32> to vector<1x1x8x8xf32>
    tpu.vector_store %arg6[%c0_6, %c0_7, %c0_8, %c0_9], %13 {strides = array<i32>} : memref<1x1x8x8xf32, #tpu.memory_space<vmem>>, vector<1x1x8x8xf32>,
    return
  }
  func.func @transform_0(%arg0: i32, %arg1: i32, %arg2: i32) -> (i32, i32, i32) {
    %c0_i32 = arith.constant 0 : i32
    %c0_i32_0 = arith.constant 0 : i32
    return %arg0, %arg1, %c0_i32 : i32, i32, i32
  }
  func.func @transform_1(%arg0: i32, %arg1: i32, %arg2: i32) -> (i32, i32, i32) {
    %c0_i32 = arith.constant 0 : i32
    %c0_i32_0 = arith.constant 0 : i32
    %c0_i32_1 = arith.constant 0 : i32
    %c0_i32_2 = arith.constant 0 : i32
    return %c0_i32, %c0_i32_0, %c0_i32_1 : i32, i32, i32
  }
  func.func @transform_2(%arg0: i32, %arg1: i32, %arg2: i32) -> (i32, i32, i32) {
    %c0_i32 = arith.constant 0 : i32
    %c0_i32_0 = arith.constant 0 : i32
    %c0_i32_1 = arith.constant 0 : i32
    %c0_i32_2 = arith.constant 0 : i32
    return %c0_i32, %c0_i32_0, %c0_i32_1 : i32, i32, i32
  }
  func.func @transform_3(%arg0: i32, %arg1: i32, %arg2: i32) -> (i32, i32, i32, i32) {
    %c0_i32 = arith.constant 0 : i32
    %c0_i32_0 = arith.constant 0 : i32
    return %arg0, %arg2, %arg1, %c0_i32 : i32, i32, i32, i32
  }
}

</mosaic_0001>

<llo_original>
// kernel: tpu_custom_call.1
$region0: #{tpu_custom_call.1}
  #allocation0 [shape = 'u32[]', space=smem, size = 0x4, offset = 0x4, fixed_abs, tag = 'smem constant byte address 0x4 - core index']
  #allocation1 [shape = 'u32[72,128]{1,0:T(1,128)}', space=vmem, size = 0x9000, scoped, tag = 'internal scratch']
  %s0 = inlined_call_operand.vmem [shape: f32[2,8,32], index: 0, kind: input, shape index: {}]
  %s1 = inlined_call_operand.vmem [shape: f32[4,32,8], index: 1, kind: input, shape index: {}]
  %s2 = inlined_call_operand.vmem [shape: f32[4,1,8], index: 2, kind: input, shape index: {}]
  %s3 = inlined_call_operand.hbm [shape: f32[2,4,8,8], index: 3, kind: output, shape index: {}]
  %s4 = sld [smem:[#allocation0]]
  $region45: #{tpu_custom_call.1} parent=0
    _
  %s6 = ssub.s32 1, %s4
  %s7 = scalar_select 0, %s6, %s4
  $region1: #{tpu_custom_call.1} parent=0
    #allocation2 [shape = 'u8[8192]{0}', space=vmem, size = 0x2000, scoped, tag = 'output window, operand 0']
    #allocation3 [shape = 's32[2]{0}', space=sflag, size = 0x8, scoped, tag = 'scoped memory for tpu_custom_call.1']
    %8 = vsyncpa [#allocation3], 0
    %s9 = scalar_lea.sflag [#allocation3], 1
    %10 = vsyncpa %s9, 0
    loop: start=0, step=1, limit=10
    $region2: #{tpu_custom_call.1} parent=1 // loop_pre_header
      _
    $region3: #{tpu_custom_call.1} parent=1 // loop_header
      %s12 = sphi 0, %s16
      %p13 = scmp.ge.s32.totalorder %s12, 10
      %s19 = sphi 0, %s38
      %s20 = sphi 0, %s34
      %s21 = sphi 0, %s30
      %s22 = sphi 0, %s19
      %s23 = sphi 0, %s20
      %s24 = sphi 0, %s21
      %s25 = sphi 0, %s22
      %s26 = sphi 0, %s23
      %s27 = sphi 0, %s24
      %s43 = sphi 0, %s45
      %s46 = sphi 0, %s43
      %s47 = sphi 0, %s46
      %s63 = sphi 0, %s47
      %s67 = sphi 0, %s67
      %s69 = sphi 0, %s67
      %s70 = sphi 0, %s69
      %s84 = sphi 0, %s70
      %s88 = sphi 0, %s88
      %s90 = sphi 0, %s88
      %s91 = sphi 0, %s90
      %s105 = sphi 0, %s91
      %s115 = sphi 0, %s117
      %s118 = sphi 0, %s115
      %s119 = sphi 0, %s118
      %s135 = sphi 0, %s119
    $region4: #{tpu_custom_call.1} parent=1 // loop_header_branch
      %15 = sbr.rel (%p13) target = $region8
    $region5: #{tpu_custom_call.1} parent=1 // loop_body
      %s17 = ssub.s32 %s12, 1
      %s18 = ssub.s32 %s12, 2
      %s28 = sadd.s32 1, %s21
      %p29 = scmp.ge.s32.totalorder %s28, 4
      %s30 = scalar_select %p29, 0, %s28
      %s31 = sadd.s32 1, %s20
      %s32 = scalar_select %p29, %s31, %s20
      %p33 = scmp.ge.s32.totalorder %s32, 1
      %s34 = scalar_select %p33, 0, %s32
      %s35 = sadd.s32 1, %s19
      %s36 = scalar_select %p33, %s35, %s19
      %p37 = scmp.ge.s32.totalorder %s36, 2
      %s38 = scalar_select %p37, 0, %s36
      %s39 = ssub.s32 %s19, %s38
      %s40 = ssub.s32 %s20, %s34
      %s41 = sor.u32 %s39, %s40
      %p42 = scmp.eq.s32.totalorder %s41, 0
      %s44 = sadd.s32 %s43, 1
      %s45 = scalar_select %p42, %s43, %s44
      %p48 = pneg %p42
      %p49 = scmp.eq.s32.totalorder %s12, 7
      %p50 = por %p48, %p49
      %p51 = scmp.ne.s32.totalorder %s43, %s46
      %p52 = scmp.eq.s32.totalorder %s12, 0
      %p53 = por %p51, %p52
      %p54 = scmp.ne.s32.totalorder %s43, %s46
      %p55 = scmp.eq.s32.totalorder %s17, 7
      %p56 = por %p54, %p55
      %p57 = scmp.ne.s32.totalorder %s46, %s47
      %p58 = scmp.eq.s32.totalorder %s17, 0
      %p59 = por %p57, %p58
      %p60 = scmp.ne.s32.totalorder %s46, %s47
      %p61 = scmp.eq.s32.totalorder %s18, 7
      %p62 = por %p60, %p61
      %p64 = scmp.ne.s32.totalorder %s47, %s63
      %p65 = scmp.eq.s32.totalorder %s18, 0
      %p66 = por %p64, %p65
      %s68 = sadd.s32 %s67, 1
      %p71 = scmp.eq.s32.totalorder %s12, 7
      %p72 = scmp.ne.s32.totalorder %s67, %s69
      %p73 = scmp.eq.s32.totalorder %s12, 0
      %p74 = por %p72, %p73
      %p75 = scmp.ne.s32.totalorder %s67, %s69
      %p76 = scmp.eq.s32.totalorder %s17, 7
      %p77 = por %p75, %p76
      %p78 = scmp.ne.s32.totalorder %s69, %s70
      %p79 = scmp.eq.s32.totalorder %s17, 0
      %p80 = por %p78, %p79
      %p81 = scmp.ne.s32.totalorder %s69, %s70
      %p82 = scmp.eq.s32.totalorder %s18, 7
      %p83 = por %p81, %p82
      %p85 = scmp.ne.s32.totalorder %s70, %s84
      %p86 = scmp.eq.s32.totalorder %s18, 0
      %p87 = por %p85, %p86
      %s89 = sadd.s32 %s88, 1
      %p92 = scmp.eq.s32.totalorder %s12, 7
      %p93 = scmp.ne.s32.totalorder %s88, %s90
      %p94 = scmp.eq.s32.totalorder %s12, 0
      %p95 = por %p93, %p94
      %p96 = scmp.ne.s32.totalorder %s88, %s90
      %p97 = scmp.eq.s32.totalorder %s17, 7
      %p98 = por %p96, %p97
      %p99 = scmp.ne.s32.totalorder %s90, %s91
      %p100 = scmp.eq.s32.totalorder %s17, 0
      %p101 = por %p99, %p100
      %p102 = scmp.ne.s32.totalorder %s90, %s91
      %p103 = scmp.eq.s32.totalorder %s18, 7
      %p104 = por %p102, %p103
      %p106 = scmp.ne.s32.totalorder %s91, %s105
      %p107 = scmp.eq.s32.totalorder %s18, 0
      %p108 = por %p106, %p107
      %s109 = ssub.s32 %s19, %s38
      %s110 = ssub.s32 %s21, %s30
      %s111 = sor.u32 %s109, %s110
      %s112 = ssub.s32 %s20, %s34
      %s113 = sor.u32 %s111, %s112
      %p114 = scmp.eq.s32.totalorder %s113, 0
      %s116 = sadd.s32 %s115, 1
      %s117 = scalar_select %p114, %s115, %s116
      %p120 = pneg %p114
      %p121 = scmp.eq.s32.totalorder %s12, 7
      %p122 = por %p120, %p121
      %p123 = scmp.ne.s32.totalorder %s115, %s118
      %p124 = scmp.eq.s32.totalorder %s12, 0
      %p125 = por %p123, %p124
      %p126 = scmp.ne.s32.totalorder %s115, %s118
      %p127 = scmp.eq.s32.totalorder %s17, 7
      %p128 = por %p126, %p127
      %p129 = scmp.ne.s32.totalorder %s118, %s119
      %p130 = scmp.eq.s32.totalorder %s17, 0
      %p131 = por %p129, %p130
      %p132 = scmp.ne.s32.totalorder %s118, %s119
      %p133 = scmp.eq.s32.totalorder %s18, 7
      %p134 = por %p132, %p133
      %p136 = scmp.ne.s32.totalorder %s119, %s135
      %p137 = scmp.eq.s32.totalorder %s18, 0
      %p138 = por %p136, %p137
      %p139 = scmp.le.s32.totalorder 1, %s12
      %p140 = scmp.lt.s32.totalorder %s12, 9
      %p141 = pnand %p139, %p140
      %p142 = pneg %p141
      // Predicated region
      $region9: #{tpu_custom_call.1} parent=5 // pred_check
        _
      $region10: #{tpu_custom_call.1} parent=5 // pred_check_branch
        %144 = sbr.rel (%p141) target = $region12
      $region11: #{tpu_custom_call.1} parent=5 // pred_region
        %s145 = ssub.s32 %s12, 1
        // Predicated region
        $region13: #{tpu_custom_call.1} parent=11 // pred_check
          %p146 = pneg %p80
        $region14: #{tpu_custom_call.1} parent=11 // pred_check_branch
          %148 = sbr.rel (%p146) target = $region16
        $region15: #{tpu_custom_call.1} parent=11 // pred_region
          _
        $region16: #{tpu_custom_call.1} parent=11 // pred_fallthru
          _
        // Predicated region
        $region17: #{tpu_custom_call.1} parent=11 // pred_check
          %p149 = pneg %p101
        $region18: #{tpu_custom_call.1} parent=11 // pred_check_branch
          %151 = sbr.rel (%p149) target = $region20
        $region19: #{tpu_custom_call.1} parent=11 // pred_region
          _
        $region20: #{tpu_custom_call.1} parent=11 // pred_fallthru
          _
      $region12: #{tpu_custom_call.1} parent=5 // pred_fallthru
        _
      %p152 = scmp.lt.s32.totalorder %s12, 8
      // Predicated region
      $region21: #{tpu_custom_call.1} parent=5 // pred_check
        %p153 = pneg %p152
      $region22: #{tpu_custom_call.1} parent=5 // pred_check_branch
        %155 = sbr.rel (%p153) target = $region24
      $region23: #{tpu_custom_call.1} parent=5 // pred_region
        // Predicated region
        $region25: #{tpu_custom_call.1} parent=23 // pred_check
          %p156 = pneg %p53
        $region26: #{tpu_custom_call.1} parent=23 // pred_check_branch
          %158 = sbr.rel (%p156) target = $region28
        $region27: #{tpu_custom_call.1} parent=23 // pred_region
          %p159 = scmp.lt.s32.totalorder %s19, 1
          %s160 = scalar_select %p159, %s19, 1
          %p161 = scmp.lt.s32.totalorder %s20, 0
          %s162 = scalar_select %p161, %s20, 0
          %s163 = sadd.s32 %s162, %s160
          %s164 = smul.addr %s163, 8
          %s165 = scalar_lea.vmem %s0, %s164
        $region28: #{tpu_custom_call.1} parent=23 // pred_fallthru
          _
      $region24: #{tpu_custom_call.1} parent=5 // pred_fallthru
        _
      %p166 = scmp.le.s32.totalorder 1, %s12
      %p167 = scmp.lt.s32.totalorder %s12, 9
      %p168 = pnand %p166, %p167
      %p169 = pneg %p168
      // Predicated region
      $region29: #{tpu_custom_call.1} parent=5 // pred_check
        _
      $region30: #{tpu_custom_call.1} parent=5 // pred_check_branch
        %171 = sbr.rel (%p168) target = $region32
      $region31: #{tpu_custom_call.1} parent=5 // pred_region
        %s172 = ssub.s32 %s12, 1
        %p173 = scmp.lt.s32.totalorder %s22, 1
        %s174 = scalar_select %p173, %s22, 1
        %p175 = scmp.lt.s32.totalorder %s23, 0
        %s176 = scalar_select %p175, %s23, 0
        %s177 = sadd.s32 %s176, %s174
        %s178 = smul.addr %s177, 8
        %s179 = scalar_lea.vmem %s0, %s178
        %p180 = pneg %p59
        %p181 = pneg %p56
        %p182 = pneg %p80
        %p183 = pneg %p77
        %p184 = pneg %p101
        %p185 = pneg %p98
        %p186 = pneg %p131
        %p187 = pneg %p128
        %s188 = sand.u32 %s118, 1
        %s189 = scalar_lea.sflag [#allocation3], %s188
        %s190 = sand.u32 %s118, 1
        %s191 = smul.addr %s190, 8
        %s192 = scalar_lea.vmem [#allocation2], %s191
        %p193 = scmp.lt.s32.totalorder %s22, 1
        %s194 = scalar_select %p193, %s22, 1
        %p195 = scmp.lt.s32.totalorder %s23, 0
        %s196 = scalar_select %p195, %s23, 0
        %s197 = sadd.s32 %s196, %s194
        %s198 = smul.addr %s197, 8
        %s199 = scalar_lea.vmem %s0, %s198
        %v200 = vld [vmem:[%s199] sm:$0xff]
        %s201 = smul.u32 %s24, 32
        %s202 = scalar_lea.vmem %s1, %s201
        %v203 = vld [vmem:[%s202] sm:$0xff]
        %v204 = vld [vmem:[%s202 + $0x8] sm:$0xff]
        %v205 = vld [vmem:[%s202 + $0x10] sm:$0xff]
        %v206 = vld [vmem:[%s202 + $0x18] sm:$0xff]
        %s207 = scalar_lea.vmem %s2, %s24
        %v208 = vld [vmem:[%s207] sm:$0x1]
        %v210 = vperm.slane %v208, 0
        %vm212 = vcmask 261120
        %v214 = vsel %vm212, %v200, 0
        %216 = vmatpush.msra.mxu0 0.0
        %217 = vmatpush.msra.mxu0 0.0
        %218 = vmatpush.msra.mxu0 0.0
        %219 = vmatpush.msra.mxu0 0.0
        %220 = vmatpush.msra.mxu0 0.0
        %221 = vmatpush.msra.mxu0 0.0
        %222 = vmatpush.msra.mxu0 0.0
        %223 = vmatpush.msra.mxu0 0.0
        %224 = vmatpush.msra.mxu0 0.0
        %225 = vmatpush.msra.mxu0 0.0
        %226 = vmatpush.msra.mxu0 0.0
        %227 = vmatpush.msra.mxu0 0.0
        %228 = vmatpush.msra.mxu0 %v206
        %229 = vmatpush.msra.mxu0 %v205
        %230 = vmatpush.msra.mxu0 %v204
        %231 = vmatpush.msra.mxu0 %v203
        %232 = vmatmul.f32.gmra.mxu0 %v214
        %v233 = vpop.f32.mrf.mxu0
        %v234 = vadd.f32 %v210, %v233
        %235 = vdwg.mxu0
        %vm236 = vcmask 64512
        %237 = vst.msk [vmem:[%s192] sm:$0xff] %vm236, %v234
        %s238 = sand.u32 %s118, 1
        %s239 = scalar_lea.sflag [#allocation3], %s238
        %s240 = sand.u32 %s118, 1
        %s241 = smul.addr %s240, 8
        %s242 = scalar_lea.vmem [#allocation2], %s241
        // Predicated region
        $region33: #{tpu_custom_call.1} parent=31 // pred_check
          %p243 = pneg %p128
        $region34: #{tpu_custom_call.1} parent=31 // pred_check_branch
          %245 = sbr.rel (%p243) target = $region36
        $region35: #{tpu_custom_call.1} parent=31 // pred_region
          %247 = vsyncadd %s239, 0
          %s248 = sadd.s32 %s23, %s24
          %s249 = smul.addr %s22, 4
          %s250 = sadd.s32 %s248, %s249
          %s251 = smul.addr %s250, 8
          %s252 = scalar_lea.hbm %s3, %s251
          %s254 = sshll.u32 %s242, 4
          %s255 = int_to_ptr.vmem [resolvable:$true] %s254
          %s256 = sshll.u32 %s252, 4
          %s257 = int_to_ptr.hbm [resolvable:$true] %s256
          %259 = dma.vmem_to_hbm [thread:$0]  %s255, 128, %s257, %s239
        $region36: #{tpu_custom_call.1} parent=31 // pred_fallthru
          _
      $region32: #{tpu_custom_call.1} parent=5 // pred_fallthru
        _
      %p260 = scmp.le.s32.totalorder 2, %s12
      // Predicated region
      $region37: #{tpu_custom_call.1} parent=5 // pred_check
        %p261 = pneg %p260
      $region38: #{tpu_custom_call.1} parent=5 // pred_check_branch
        %263 = sbr.rel (%p261) target = $region40
      $region39: #{tpu_custom_call.1} parent=5 // pred_region
        %s264 = ssub.s32 %s12, 2
        // Predicated region
        $region41: #{tpu_custom_call.1} parent=39 // pred_check
          %p265 = pneg %p134
        $region42: #{tpu_custom_call.1} parent=39 // pred_check_branch
          %267 = sbr.rel (%p265) target = $region44
        $region43: #{tpu_custom_call.1} parent=39 // pred_region
          %s268 = sand.u32 %s119, 1
          %s269 = scalar_lea.sflag [#allocation3], %s268
          %s270 = sand.u32 %s119, 1
          %s271 = smul.addr %s270, 8
          %s272 = scalar_lea.vmem [#allocation2], %s271
          %274 = dma.done %s269, 128
        $region44: #{tpu_custom_call.1} parent=39 // pred_fallthru
          _
      $region40: #{tpu_custom_call.1} parent=5 // pred_fallthru
        _
    $region6: #{tpu_custom_call.1} parent=1 // loop_footer
      %s16 = sadd.s32 1, %s12
    $region7: #{tpu_custom_call.1} parent=1 // loop_footer_branch
      %11 = sbr.rel target = $region3
    $region8: #{tpu_custom_call.1} parent=1 // loop_exit
      _
    %275 = vsyncpa [#allocation3], 1
    %s276 = scalar_lea.sflag [#allocation3], 1
    %277 = vsyncpa %s276, 1

</llo_original>
